<compile_context>
chip_gen: v7x
topology: tpu7x:2x2x1
jax: 0.10.0
libtpu: 0.0.40
codegen_flags: <defaults>
</compile_context>

<pallas_src>
import jax
import jax.numpy as jnp
from jax.experimental import pallas as pl
from jax.experimental.pallas import tpu as pltpu


# ---------------------------------------------------------------------------
# Kernel
# ---------------------------------------------------------------------------
def controller_kernel(x_ref, w1_ref, b1_ref, w2_ref, o_ref):
    # x_ref : (D, TB)  bf16   batch-on-lanes tile of the input
    # w1_ref: (64, D)  bf16   first-layer weight (VMEM-resident across grid)
    # b1_ref: (64, 1)  f32    first-layer bias (sublane column)
    # w2_ref: (64, 1)  f32    second-layer weight column
    # o_ref : (1, TB)  f32    lane-dense output tile

    # Layer 1: MXU matmul with f32 accumulation, then relu on the VPU.
    z1 = jnp.dot(w1_ref[...], x_ref[...], preferred_element_type=jnp.float32)
    z1 = jnp.maximum(z1 + b1_ref[...], 0.0)                 # (64, TB)

    # Layer 2: 64 -> 1.  A (TB,64)@(64,1) GEMV would use <1% of the MXU, so do
    # it as a VPU multiply + sublane reduce instead.
    z2 = jnp.sum(z1 * w2_ref[...], axis=0, keepdims=True)   # (1, TB)

    # Softplus matching PyTorch defaults (beta=1, threshold=20): linear above 20.
    sp = jnp.log1p(jnp.exp(jnp.minimum(z2, 20.0)))
    o_ref[...] = jnp.where(z2 > 20.0, z2, sp)


# ---------------------------------------------------------------------------
# Wrapper
# ---------------------------------------------------------------------------
def _round_up(a, m):
    return (a + m - 1) // m * m


def prepare_controller_params(w1, b1, w2):
    """One-time parameter prep (hoisted out of the per-call path).

    w1: (64, D), b1: (64,), w2: (1, 64) in PyTorch convention.
    Returns (w1_bf16 (64,D), b1_col f32 (64,1), w2_col f32 (64,1)).
    """
    w1_bf = w1.astype(jnp.bfloat16)                  # used directly, no transpose
    b1_col = b1.reshape(64, 1).astype(jnp.float32)   # sublane-broadcast column
    w2_col = w2.reshape(64, 1).astype(jnp.float32)   # (1,64) -> column
    return w1_bf, b1_col, w2_col


def controller_forward(x, params, *, max_tile=1024):
    """x: (B, D) f32.  params from prepare_controller_params.  Returns (B, 1) f32."""
    w1_bf, b1_col, w2_col = params
    B, D = x.shape
    H = w1_bf.shape[0]                                # 64

    # Batch tile: multiple of 128 lanes, 512-1024 rows when B is large.
    TB = min(max_tile, _round_up(B, 128))
    B_pad = _round_up(B, TB)

    # Batch-on-lanes layout; bf16 halves the HBM bytes streamed for x.
    x_t = x.astype(jnp.bfloat16).T                    # (D, B)
    if B_pad != B:
        x_t = jnp.pad(x_t, ((0, 0), (0, B_pad - B)))  # (D, B_pad)

    out = pl.pallas_call(
        controller_kernel,
        out_shape=jax.ShapeDtypeStruct((1, B_pad), jnp.float32),
        grid=(B_pad // TB,),
        in_specs=[
            pl.BlockSpec((D, TB), lambda i: (0, i)),   # x tile, marches over batch
            pl.BlockSpec((H, D), lambda i: (0, 0)),    # w1 resident
            pl.BlockSpec((H, 1), lambda i: (0, 0)),    # b1 resident
            pl.BlockSpec((H, 1), lambda i: (0, 0)),    # w2 resident
        ],
        out_specs=pl.BlockSpec((1, TB), lambda i: (0, i)),  # lane-dense output
        compiler_params=pltpu.CompilerParams(
            dimension_semantics=("parallel",)),        # shard batch across TCs (v7x)
    )(x_t, w1_bf, b1_col, w2_col)

    return out[0, :B].reshape(B, 1)


# ---------------------------------------------------------------------------
# Reference / test harness
# ---------------------------------------------------------------------------
def _init_linear(key, out_features, in_features, bias=True):
    """Deterministic init mimicking nn.Linear default (uniform +-1/sqrt(fan_in))."""
    kw, kb = jax.random.split(key)
    bound = 1.0 / jnp.sqrt(jnp.float32(in_features))
    w = jax.random.uniform(kw, (out_features, in_features), jnp.float32,
                           minval=-bound, maxval=bound)
    b = None
    if bias:
        b = jax.random.uniform(kb, (out_features,), jnp.float32,
                               minval=-bound, maxval=bound)
    return w, b


def _reference_f32(x, w1, b1, w2):
    z1 = jax.nn.relu(x @ w1.T + b1)
    return jax.nn.softplus(z1 @ w2.T)


def _reference_bf16_path(x, w1, b1, w2):
    # Same precision path as the kernel: bf16 layer-1 inputs, f32 accumulation,
    # f32 layer 2 + softplus with PyTorch's threshold=20 branch.
    z1 = jnp.dot(x.astype(jnp.bfloat16), w1.astype(jnp.bfloat16).T,
                 preferred_element_type=jnp.float32) + b1
    z1 = jnp.maximum(z1, 0.0)
    z2 = z1 @ w2.T.astype(jnp.float32)
    return jnp.where(z2 > 20.0, z2, jnp.log1p(jnp.exp(jnp.minimum(z2, 20.0))))


if __name__ == "__main__":
    D = 32  # dim1

    key = jax.random.PRNGKey(0)
    kx_small, kx_large, k1, k2 = jax.random.split(key, 4)

    w1, b1 = _init_linear(k1, 64, D, bias=True)
    w2, _ = _init_linear(k2, 1, 64, bias=False)
    params = prepare_controller_params(w1, b1, w2)

    for B, kx in ((8, kx_small), (2000, kx_large)):  # single-tile and multi-tile grid
        x = jax.random.normal(kx, (B, D), jnp.float32)

        out = jax.block_until_ready(controller_forward(x, params))
        assert out.shape == (B, 1), out.shape

        # Tight check against a reference using the same bf16 matmul precision.
        ref_bf = _reference_bf16_path(x, w1, b1, w2)
        err_bf = float(jnp.max(jnp.abs(out - ref_bf)))
        assert jnp.allclose(out, ref_bf, atol=1e-3, rtol=1e-3), err_bf

        # Semantic check against the pure f32 PyTorch-equivalent forward
        # (looser tolerance because layer-1 inputs are streamed in bf16).
        ref_f32 = _reference_f32(x, w1, b1, w2)
        err_f32 = float(jnp.max(jnp.abs(out - ref_f32)))
        assert jnp.allclose(out, ref_f32, atol=5e-2, rtol=5e-2), err_f32

    print("KERNEL_OK")
</pallas_src>

<mosaic_0001>
module attributes {stable_mosaic.version = 11 : i64} {
  func.func @controller_kernel(%arg0: i32, %arg1: memref<32x128xbf16, #tpu.memory_space<vmem>>, %arg2: memref<64x32xbf16, #tpu.memory_space<vmem>>, %arg3: memref<64x1xf32, #tpu.memory_space<vmem>>, %arg4: memref<64x1xf32, #tpu.memory_space<vmem>>, %arg5: memref<1x128xf32, #tpu.memory_space<vmem>>) attributes {dimension_semantics = [#tpu.dimension_semantics<parallel>], iteration_bounds = array<i64: 1>, scalar_prefetch = 0 : i64, scratch_operands = 0 : i64, tpu.core_type = #tpu.core_type<tc>, window_params = [{transform_indices = @transform_0, window_bounds = array<i64: 32, 128>}, {pipeline_mode = #tpu.pipeline_mode<synchronous>, transform_indices = @transform_1, window_bounds = array<i64: 64, 32>}, {pipeline_mode = #tpu.pipeline_mode<synchronous>, transform_indices = @transform_2, window_bounds = array<i64: 64, 1>}, {pipeline_mode = #tpu.pipeline_mode<synchronous>, transform_indices = @transform_3, window_bounds = array<i64: 64, 1>}, {transform_indices = @transform_4, window_bounds = array<i64: 1, 128>}]} {
    %c0 = arith.constant 0 : index
    %c0_0 = arith.constant 0 : index
    %0 = vector.load %arg2[%c0, %c0_0] : memref<64x32xbf16, #tpu.memory_space<vmem>>, vector<64x32xbf16>
    %c0_1 = arith.constant 0 : index
    %c0_2 = arith.constant 0 : index
    %1 = vector.load %arg1[%c0_1, %c0_2] : memref<32x128xbf16, #tpu.memory_space<vmem>>, vector<32x128xbf16>
    %cst = arith.constant dense<0.000000e+00> : vector<64x128xf32>
    %2 = tpu.matmul %0, %1, %cst {dimension_numbers = #tpu.dot_dimension_numbers<[1], [0], [0], [1], [0, 0, 1, 1], [], []>} : vector<64x32xbf16>, vector<32x128xbf16>, vector<64x128xf32> -> vector<64x128xf32>
    %c0_3 = arith.constant 0 : index
    %c0_4 = arith.constant 0 : index
    %3 = vector.load %arg3[%c0_3, %c0_4] : memref<64x1xf32, #tpu.memory_space<vmem>>, vector<64x1xf32>
    %4 = vector.broadcast %3 : vector<64x1xf32> to vector<64x128xf32>
    %5 = arith.addf %2, %4 : vector<64x128xf32>
    %cst_5 = arith.constant 0.000000e+00 : f32
    %6 = vector.broadcast %cst_5 : f32 to vector<64x128xf32>
    %7 = arith.maximumf %5, %6 : vector<64x128xf32>
    %c0_6 = arith.constant 0 : index
    %c0_7 = arith.constant 0 : index
    %8 = vector.load %arg4[%c0_6, %c0_7] : memref<64x1xf32, #tpu.memory_space<vmem>>, vector<64x1xf32>
    %9 = vector.broadcast %8 : vector<64x1xf32> to vector<64x128xf32>
    %10 = arith.mulf %7, %9 : vector<64x128xf32>
    %cst_8 = arith.constant dense<0.000000e+00> : vector<128xf32>
    %11 = vector.multi_reduction <add>, %10, %cst_8 [0] : vector<64x128xf32> to vector<128xf32>
    %12 = vector.shape_cast %11 : vector<128xf32> to vector<1x128xf32>
    %cst_9 = arith.constant 2.000000e+01 : f32
    %13 = vector.broadcast %cst_9 : f32 to vector<1x128xf32>
    %14 = arith.minimumf %12, %13 : vector<1x128xf32>
    %15 = math.exp %14 : vector<1x128xf32>
    %16 = math.log1p %15 : vector<1x128xf32>
    %cst_10 = arith.constant 2.000000e+01 : f32
    %17 = vector.broadcast %cst_10 : f32 to vector<1x128xf32>
    %18 = arith.cmpf ogt, %12, %17 : vector<1x128xf32>
    %19 = arith.select %18, %12, %16 : vector<1x128xi1>, vector<1x128xf32>
    %c0_11 = arith.constant 0 : index
    %c0_12 = arith.constant 0 : index
    %20 = vector.load %arg5[%c0_11, %c0_12] : memref<1x128xf32, #tpu.memory_space<vmem>>, vector<1x128xf32>
    tpu.vector_store %arg5[%c0_11, %c0_12], %19 {strides = array<i32>} : memref<1x128xf32, #tpu.memory_space<vmem>>, vector<1x128xf32>,
    return
  }
  func.func @transform_0(%arg0: i32) -> (i32, i32) {
    %c0_i32 = arith.constant 0 : i32
    %c0_i32_0 = arith.constant 0 : i32
    return %c0_i32, %arg0 : i32, i32
  }
  func.func @transform_1(%arg0: i32) -> (i32, i32) {
    %c0_i32 = arith.constant 0 : i32
    %c0_i32_0 = arith.constant 0 : i32
    %c0_i32_1 = arith.constant 0 : i32
    return %c0_i32, %c0_i32_0 : i32, i32
  }
  func.func @transform_2(%arg0: i32) -> (i32, i32) {
    %c0_i32 = arith.constant 0 : i32
    %c0_i32_0 = arith.constant 0 : i32
    %c0_i32_1 = arith.constant 0 : i32
    return %c0_i32, %c0_i32_0 : i32, i32
  }
  func.func @transform_3(%arg0: i32) -> (i32, i32) {
    %c0_i32 = arith.constant 0 : i32
    %c0_i32_0 = arith.constant 0 : i32
    %c0_i32_1 = arith.constant 0 : i32
    return %c0_i32, %c0_i32_0 : i32, i32
  }
  func.func @transform_4(%arg0: i32) -> (i32, i32) {
    %c0_i32 = arith.constant 0 : i32
    %c0_i32_0 = arith.constant 0 : i32
    return %c0_i32, %arg0 : i32, i32
  }
}

</mosaic_0001>

<llo_original>
// kernel: tpu_custom_call.1
$region0: #{tpu_custom_call.1}
  #allocation0 [shape = 'u32[]', space=smem, size = 0x4, offset = 0x4, fixed_abs, tag = 'smem constant byte address 0x4 - core index']
  #allocation1 [shape = 'u32[144,128]{1,0:T(1,128)}', space=vmem, size = 0x12000, scoped, tag = 'internal scratch']
  %s0 = inlined_call_operand.vmem [shape: bf16[32,128], index: 0, kind: input, shape index: {}]
  %s1 = inlined_call_operand.vmem [shape: bf16[64,32], index: 1, kind: input, shape index: {}]
  %s2 = inlined_call_operand.vmem [shape: f32[64,1], index: 2, kind: input, shape index: {}]
  %s3 = inlined_call_operand.vmem [shape: f32[64,1], index: 3, kind: input, shape index: {}]
  %s4 = inlined_call_operand.hbm [shape: f32[1,128], index: 4, kind: output, shape index: {}]
  %s5 = sld [smem:[#allocation0]]
  $region26: #{tpu_custom_call.1} parent=0
    _
  %s7 = ssub.s32 1, %s5
  %s8 = scalar_select 0, %s7, %s5
  $region1: #{tpu_custom_call.1} parent=0
    #allocation2 [shape = 'u8[512]{0}', space=vmem, size = 0x400, scoped, tag = 'output window, operand 0, single buffered']
    #allocation3 [shape = 's32[1]{0}', space=sflag, size = 0x4, scoped, tag = 'scoped memory for tpu_custom_call.1']
    %9 = vsyncpa [#allocation3], 0
    // Predicated region
    $region2: #{tpu_custom_call.1} parent=1 // pred_check
      _
    $region3: #{tpu_custom_call.1} parent=1 // pred_check_branch
      %11 = sbr.rel (0) target = $region5
    $region4: #{tpu_custom_call.1} parent=1 // pred_region
      _
    $region5: #{tpu_custom_call.1} parent=1 // pred_fallthru
      _
    // Predicated region
    $region6: #{tpu_custom_call.1} parent=1 // pred_check
      _
    $region7: #{tpu_custom_call.1} parent=1 // pred_check_branch
      %13 = sbr.rel (0) target = $region9
    $region8: #{tpu_custom_call.1} parent=1 // pred_region
      _
    $region9: #{tpu_custom_call.1} parent=1 // pred_fallthru
      _
    // Predicated region
    $region10: #{tpu_custom_call.1} parent=1 // pred_check
      _
    $region11: #{tpu_custom_call.1} parent=1 // pred_check_branch
      %15 = sbr.rel (0) target = $region13
    $region12: #{tpu_custom_call.1} parent=1 // pred_region
      _
    $region13: #{tpu_custom_call.1} parent=1 // pred_fallthru
      _
    // Predicated region
    $region14: #{tpu_custom_call.1} parent=1 // pred_check
      _
    $region15: #{tpu_custom_call.1} parent=1 // pred_check_branch
      %17 = sbr.rel (0) target = $region17
    $region16: #{tpu_custom_call.1} parent=1 // pred_region
      _
    $region17: #{tpu_custom_call.1} parent=1 // pred_fallthru
      _
    %v19 = vld [vmem:[%s1] sm:$0xf]
    %v20 = vld [vmem:[%s1 + $0x4] sm:$0xf]
    %v21 = vld [vmem:[%s1 + $0x8] sm:$0xf]
    %v22 = vld [vmem:[%s1 + $0xc] sm:$0xf]
    %v23 = vld [vmem:[%s1 + $0x10] sm:$0xf]
    %v24 = vld [vmem:[%s1 + $0x14] sm:$0xf]
    %v25 = vld [vmem:[%s1 + $0x18] sm:$0xf]
    %v26 = vld [vmem:[%s1 + $0x1c] sm:$0xf]
    %v27 = vld [vmem:[%s0] sm:$0xf]
    %v28 = vld [vmem:[%s0 + $0x4] sm:$0xf]
    %v29 = vld [vmem:[%s0 + $0x8] sm:$0xf]
    %v30 = vld [vmem:[%s0 + $0xc] sm:$0xf]
    %v31 = vld [vmem:[%s2] sm:$0xff]
    %v32 = vld [vmem:[%s2 + $0x8] sm:$0xff]
    %v33 = vld [vmem:[%s2 + $0x10] sm:$0xff]
    %v34 = vld [vmem:[%s2 + $0x18] sm:$0xff]
    %v35 = vld [vmem:[%s2 + $0x20] sm:$0xff]
    %v36 = vld [vmem:[%s2 + $0x28] sm:$0xff]
    %v37 = vld [vmem:[%s2 + $0x30] sm:$0xff]
    %v38 = vld [vmem:[%s2 + $0x38] sm:$0xff]
    %40 = vset.pattern.permute.xlu0 0
    %41 = vperm.xlu0 %40, %v31
    %v42 = vpop.permute.xlu0 %41
    %45 = vset.pattern.permute.xlu0 0
    %46 = vperm.xlu0 %45, %v32
    %v47 = vpop.permute.xlu0 %46
    %50 = vset.pattern.permute.xlu0 0
    %51 = vperm.xlu0 %50, %v33
    %v52 = vpop.permute.xlu0 %51
    %55 = vset.pattern.permute.xlu0 0
    %56 = vperm.xlu0 %55, %v34
    %v57 = vpop.permute.xlu0 %56
    %60 = vset.pattern.permute.xlu0 0
    %61 = vperm.xlu0 %60, %v35
    %v62 = vpop.permute.xlu0 %61
    %65 = vset.pattern.permute.xlu0 0
    %66 = vperm.xlu0 %65, %v36
    %v67 = vpop.permute.xlu0 %66
    %70 = vset.pattern.permute.xlu0 0
    %71 = vperm.xlu0 %70, %v37
    %v72 = vpop.permute.xlu0 %71
    %75 = vset.pattern.permute.xlu0 0
    %76 = vperm.xlu0 %75, %v38
    %v77 = vpop.permute.xlu0 %76
    %v87 = vunpack.c.l.b16 %v19
    %v88 = vunpack.c.l.b16 %v20
    %v89 = vunpack.c.l.b16 %v21
    %v90 = vunpack.c.l.b16 %v22
    %v91 = vunpack.c.l.b16 %v23
    %v92 = vunpack.c.l.b16 %v24
    %v93 = vunpack.c.l.b16 %v25
    %v94 = vunpack.c.l.b16 %v26
    %v95 = vpack.c.b16 %v88, %v87
    %v96 = vpack.c.b16 %v90, %v89
    %v97 = vpack.c.b16 %v92, %v91
    %v98 = vpack.c.b16 %v94, %v93
    %v103 = vunpack.c.l.b16 %v27
    %v104 = vunpack.c.l.b16 %v28
    %v105 = vunpack.c.l.b16 %v29
    %v106 = vunpack.c.l.b16 %v30
    %v107 = vpack.c.b16 %v104, %v103
    %v108 = vpack.c.b16 %v106, %v105
    %vm111 = vcmask 261120
    %v113 = vsel %vm111, %v95, 0
    %v116 = vsel %vm111, %v96, 0
    %v119 = vsel %vm111, %v97, 0
    %v122 = vsel %vm111, %v98, 0
    %124 = vmatprep.subr.bf16.mxu0 0
    %125 = vmatpush1.bf16.msra.mxu0 %v107
    %126 = vmatprep.subr.bf16.mxu0 0
    %127 = vmatpush1.bf16.msra.mxu0 %v108
    %128 = vmatprep.subr.bf16.mxu0 0
    %129 = vmatpush1.bf16.msra.mxu0 0
    %130 = vmatprep.subr.bf16.mxu0 0
    %131 = vmatpush1.bf16.msra.mxu0 0
    %132 = vmatprep.subr.bf16.mxu0 0
    %133 = vmatpush1.bf16.msra.mxu0 0
    %134 = vmatprep.subr.bf16.mxu0 0
    %135 = vmatpush1.bf16.msra.mxu0 0
    %136 = vmatprep.subr.bf16.mxu0 0
    %137 = vmatpush1.bf16.msra.mxu0 0
    %138 = vmatprep.subr.bf16.mxu0 0
    %139 = vmatpush1.bf16.msra.mxu0 0
    %140 = vmatprep.subr.bf16.mxu0 0
    %141 = vmatpush1.bf16.msra.mxu0 0
    %142 = vmatprep.subr.bf16.mxu0 0
    %143 = vmatpush1.bf16.msra.mxu0 0
    %144 = vmatprep.subr.bf16.mxu0 0
    %145 = vmatpush1.bf16.msra.mxu0 0
    %146 = vmatprep.subr.bf16.mxu0 0
    %147 = vmatpush1.bf16.msra.mxu0 0
    %148 = vmatprep.subr.bf16.mxu0 0
    %149 = vmatpush1.bf16.msra.mxu0 0
    %150 = vmatprep.subr.bf16.mxu0 0
    %151 = vmatpush1.bf16.msra.mxu0 0
    %152 = vmatprep.subr.bf16.mxu0 0
    %153 = vmatpush1.bf16.msra.mxu0 0
    %154 = vmatprep.subr.bf16.mxu0 0
    %155 = vmatpush1.bf16.msra.mxu0 0
    %156 = vmatprep.mubr.bf16.mxu0 0
    %157 = vmatmul.mubr.bf16.gmra.mrb[0].mxu0 %v113
    %v158 = vpop.f32.mrb[0].mxu0
    %v159 = vadd.f32 %v42, %v158
    %v160 = vpop.f32.mrb[0].mxu0
    %v161 = vpop.f32.mrb[0].mxu0
    %v162 = vadd.f32 %v47, %v161
    %v163 = vpop.f32.mrb[0].mxu0
    %164 = vmatprep.mubr.bf16.mxu0 0
    %165 = vmatmul.mubr.bf16.gmra.mrb[0].mxu0 %v116
    %v166 = vpop.f32.mrb[0].mxu0
    %v167 = vadd.f32 %v52, %v166
    %v168 = vpop.f32.mrb[0].mxu0
    %v169 = vpop.f32.mrb[0].mxu0
    %v170 = vadd.f32 %v57, %v169
    %v171 = vpop.f32.mrb[0].mxu0
    %172 = vmatprep.mubr.bf16.mxu0 0
    %173 = vmatmul.mubr.bf16.gmra.mrb[0].mxu0 %v119
    %v174 = vpop.f32.mrb[0].mxu0
    %v175 = vadd.f32 %v62, %v174
    %v176 = vpop.f32.mrb[0].mxu0
    %v177 = vpop.f32.mrb[0].mxu0
    %v178 = vadd.f32 %v67, %v177
    %v179 = vpop.f32.mrb[0].mxu0
    %180 = vmatprep.mubr.bf16.mxu0 0
    %181 = vmatmul.mubr.bf16.gmra.mrb[0].mxu0 %v122
    %v182 = vpop.f32.mrb[0].mxu0
    %v183 = vadd.f32 %v72, %v182
    %v184 = vpop.f32.mrb[0].mxu0
    %v185 = vpop.f32.mrb[0].mxu0
    %v186 = vadd.f32 %v77, %v185
    %v187 = vpop.f32.mrb[0].mxu0
    %188 = vdwg.mxu0
    %v189 = vmax.f32 %v159, 0.0
    %v190 = vmax.f32 %v162, 0.0
    %v191 = vmax.f32 %v167, 0.0
    %v192 = vmax.f32 %v170, 0.0
    %v193 = vmax.f32 %v175, 0.0
    %v194 = vmax.f32 %v178, 0.0
    %v195 = vmax.f32 %v183, 0.0
    %v196 = vmax.f32 %v186, 0.0
    %v197 = vld [vmem:[%s3] sm:$0xff]
    %v198 = vld [vmem:[%s3 + $0x8] sm:$0xff]
    %v199 = vld [vmem:[%s3 + $0x10] sm:$0xff]
    %v200 = vld [vmem:[%s3 + $0x18] sm:$0xff]
    %v201 = vld [vmem:[%s3 + $0x20] sm:$0xff]
    %v202 = vld [vmem:[%s3 + $0x28] sm:$0xff]
    %v203 = vld [vmem:[%s3 + $0x30] sm:$0xff]
    %v204 = vld [vmem:[%s3 + $0x38] sm:$0xff]
    %206 = vset.pattern.permute.xlu0 0
    %207 = vperm.xlu0 %206, %v197
    %v208 = vpop.permute.xlu0 %207
    %211 = vset.pattern.permute.xlu0 0
    %212 = vperm.xlu0 %211, %v198
    %v213 = vpop.permute.xlu0 %212
    %216 = vset.pattern.permute.xlu0 0
    %217 = vperm.xlu0 %216, %v199
    %v218 = vpop.permute.xlu0 %217
    %221 = vset.pattern.permute.xlu0 0
    %222 = vperm.xlu0 %221, %v200
    %v223 = vpop.permute.xlu0 %222
    %226 = vset.pattern.permute.xlu0 0
    %227 = vperm.xlu0 %226, %v201
    %v228 = vpop.permute.xlu0 %227
    %231 = vset.pattern.permute.xlu0 0
    %232 = vperm.xlu0 %231, %v202
    %v233 = vpop.permute.xlu0 %232
    %236 = vset.pattern.permute.xlu0 0
    %237 = vperm.xlu0 %236, %v203
    %v238 = vpop.permute.xlu0 %237
    %241 = vset.pattern.permute.xlu0 0
    %242 = vperm.xlu0 %241, %v204
    %v243 = vpop.permute.xlu0 %242
    %v245 = vmul.f32 %v189, %v208
    %v246 = vmul.f32 %v190, %v213
    %v247 = vmul.f32 %v191, %v218
    %v248 = vmul.f32 %v192, %v223
    %v249 = vmul.f32 %v193, %v228
    %v250 = vmul.f32 %v194, %v233
    %v251 = vmul.f32 %v195, %v238
    %v252 = vmul.f32 %v196, %v243
    %v253 = vadd.f32 %v245, %v246
    %v254 = vadd.f32 %v253, %v247
    %v255 = vadd.f32 %v254, %v248
    %v256 = vadd.f32 %v255, %v249
    %v257 = vadd.f32 %v256, %v250
    %v258 = vadd.f32 %v257, %v251
    %v259 = vadd.f32 %v258, %v252
    %v260 = vrot.slane %v259, 4
    %v261 = vadd.f32 %v259, %v260
    %v262 = vrot.slane %v261, 2
    %v263 = vadd.f32 %v261, %v262
    %v264 = vrot.slane %v263, 1
    %v265 = vadd.f32 %v263, %v264
    %v266 = vmin.f32 %v265, 20.0
    %v267 = vmul.f32 %v266, 1.442695
    %v268 = vpow.pop %v267
    %v269 = vadd.f32 %v268, 1.0
    %v270 = vlog2.pop %v269
    %v271 = vmul.f32 %v270, 0.6931472
    %v272 = vmul.f32 -0.5, %v268
    %v273 = vadd.f32 %v272, 1.0
    %v274 = vmul.f32 %v273, %v268
    %v275 = vand.u32 2147483647, %v268
    %vm276 = vcmp.lt.f32.partialorder %v275, 0.0004427343
    %v277 = vsel %vm276, %v274, %v271
    %vm278 = vcmp.gt.f32.partialorder %v265, 20.0
    %v279 = vsel %vm278, %v265, %v277
    %280 = vst [vmem:[#allocation2] sm:$0x1] %v279
    // Predicated region
    $region18: #{tpu_custom_call.1} parent=1 // pred_check
      _
    $region19: #{tpu_custom_call.1} parent=1 // pred_check_branch
      %282 = sbr.rel (0) target = $region21
    $region20: #{tpu_custom_call.1} parent=1 // pred_region
      %s284 = ssub.s32 16, 16
      %285 = vsyncadd [#allocation3], %s284
      %s287 = sshll.u32 [#allocation2], 4
      %s288 = int_to_ptr.vmem [resolvable:$true] %s287
      %290 = dma.vmem_to_hbm [thread:$0]  %s288, 16, %s4, [#allocation3]
    $region21: #{tpu_custom_call.1} parent=1 // pred_fallthru
      _
    // Predicated region
    $region22: #{tpu_custom_call.1} parent=1 // pred_check
      _
    $region23: #{tpu_custom_call.1} parent=1 // pred_check_branch
      %292 = sbr.rel (0) target = $region25
    $region24: #{tpu_custom_call.1} parent=1 // pred_region
      %293 = dma.done [#allocation3], 16
    $region25: #{tpu_custom_call.1} parent=1 // pred_fallthru
      _
    %294 = vsyncpa [#allocation3], 1

</llo_original>
